<compile_context>
chip_gen: v7x
topology: tpu7x:2x2x1
jax: 0.10.0
libtpu: 0.0.40
codegen_flags: <defaults>
</compile_context>

<pallas_src>
import functools

import jax
import jax.numpy as jnp
from jax.experimental import pallas as pl
from jax.experimental.pallas import tpu as pltpu

LANE = 128


def _round_up(a, b):
    return (a + b - 1) // b * b


# -----------------------------------------------------------------------------
# Fused kernel: per (spatial-tile, depth) grid step, for every channel group g
# (one group per scan direction):
#   x slab (C, tS) -> fused first layer (2C, C) -> split z/f hiddens
#   -> dense (n, C) second layers -> z, f (n, tS) -> recurrent update -> y slab.
# The scan direction over D is entirely in the index_map of that group's refs.
# -----------------------------------------------------------------------------
def _mhrsa_fused_kernel(*refs, group_sizes, C):
    G = len(group_sizes)
    x_refs = refs[0:G]
    wa_ref = refs[G]                                   # (2C, C)  = [W1z^T ; W1f^T]
    ba_ref = refs[G + 1]                               # (2C, 1)
    w2_refs = [refs[G + 2 + 2 * g] for g in range(G)]  # (2n, C)  = [W2z^T rows ; W2f^T rows]
    b2_refs = [refs[G + 3 + 2 * g] for g in range(G)]  # (2n, 1)
    base = 3 * G + 2
    y_refs = refs[base:base + G]
    h_refs = refs[base + G:base + 2 * G]

    d = pl.program_id(1)

    @pl.when(d == 0)
    def _():
        # h = None  =>  first step is (1 - f) * z, identical to starting from h = 0.
        for h_ref in h_refs:
            h_ref[...] = jnp.zeros_like(h_ref)

    for g in range(G):
        n = group_sizes[g]
        x2d = x_refs[g][0]                                       # (C, tS), lanes = spatial

        # First layers of BOTH MLPs fused into one MXU push.
        h1 = jnp.tanh(
            jnp.dot(wa_ref[...], x2d, preferred_element_type=jnp.float32)
            + ba_ref[...])                                       # (2C, tS)

        # Dense second layers on the respective hidden halves (no zero padding).
        w2 = w2_refs[g][...]
        b2 = b2_refs[g][...]
        z = jnp.tanh(
            jnp.dot(w2[:n], h1[:C], preferred_element_type=jnp.float32) + b2[:n])
        f = jax.nn.sigmoid(
            jnp.dot(w2[n:], h1[C:], preferred_element_type=jnp.float32) + b2[n:])

        # Recurrent spectral update (elementwise, VPU).
        h = f * h_refs[g][...] + (1.0 - f) * z
        h_refs[g][...] = h
        y_refs[g][0] = h


def _fused_scan(x_s, wa, ba, group_w2, group_b2, group_flip, group_sizes, t_s):
    """Run all channel groups / scan directions in one fused pallas_call.

    x_s: (D, C, S_pad) f32, spatial (lane-dense) last.
    Returns a list of y_g: (D, n_g, S_pad) f32, one per channel group.
    """
    D, C, S_pad = x_s.shape
    G = len(group_sizes)
    assert S_pad % t_s == 0 and t_s % LANE == 0

    def depth_map(flip):
        if flip:   # reverse scan over D, expressed purely via the index_map
            return lambda s, d: (D - 1 - d, 0, s)
        return lambda s, d: (d, 0, s)

    const_map = lambda s, d: (0, 0)

    in_specs, args = [], []
    for g in range(G):
        in_specs.append(pl.BlockSpec((1, C, t_s), depth_map(group_flip[g])))
        args.append(x_s)                               # same array, per-direction map
    in_specs += [pl.BlockSpec((2 * C, C), const_map),
                 pl.BlockSpec((2 * C, 1), const_map)]
    args += [wa, ba]
    for g in range(G):
        n = group_sizes[g]
        in_specs += [pl.BlockSpec((2 * n, C), const_map),
                     pl.BlockSpec((2 * n, 1), const_map)]
        args += [group_w2[g], group_b2[g]]

    out_shapes, out_specs, scratch = [], [], []
    for g in range(G):
        n = group_sizes[g]
        out_shapes.append(jax.ShapeDtypeStruct((D, n, S_pad), jnp.float32))
        out_specs.append(pl.BlockSpec((1, n, t_s), depth_map(group_flip[g])))
        scratch.append(pltpu.VMEM((n, t_s), jnp.float32))         # recurrent state h_g

    outs = pl.pallas_call(
        functools.partial(_mhrsa_fused_kernel,
                          group_sizes=tuple(group_sizes), C=C),
        out_shape=tuple(out_shapes),
        grid_spec=pltpu.PrefetchScalarGridSpec(
            num_scalar_prefetch=0,
            grid=(S_pad // t_s, D),                    # (parallel spatial, sequential D)
            in_specs=in_specs,
            out_specs=out_specs,
            scratch_shapes=scratch,
        ),
        compiler_params=pltpu.CompilerParams(
            dimension_semantics=("parallel", "arbitrary")),
    )(*args)
    return list(outs) if isinstance(outs, (tuple, list)) else [outs]


# -----------------------------------------------------------------------------
# Full MHRSA forward.
# -----------------------------------------------------------------------------
def mhrsa_forward(x, params, multi_head=True, reverse=False, s_tile=1024):
    B, C, D, H, W = x.shape
    S = B * H * W

    # Single layout pass: (B,C,D,H,W) -> (D, C, B*H*W), spatial in lanes.
    x_s = jnp.transpose(x, (2, 1, 0, 3, 4)).reshape(D, C, S)

    # Lane-dense spatial tiling (pad S to a multiple of the tile; padded columns
    # are independent elementwise work that is sliced away afterwards).
    t_s = min(_round_up(max(LANE, s_tile), LANE), _round_up(S, LANE))
    S_pad = _round_up(S, t_s)
    if S_pad != S:
        x_s = jnp.pad(x_s, ((0, 0), (0, 0), (0, S_pad - S)))

    # Fused first-layer weights (shared by both directions / MLPs).
    wa = jnp.concatenate([params["w1z"].T, params["w1f"].T], axis=0)      # (2C, C)
    ba = jnp.concatenate([params["b1z"][0], params["b1f"][0]])[:, None]   # (2C, 1)

    # Channel groups and their scan direction.  Algebraic identity:
    #   flip_D(scan_fwd(flip_D(z), flip_D(f))) == scan_rev(z, f)
    # so the multi-head "flip second half along D" + final un-flip is exactly a
    # reverse-direction scan on those channels (and `reverse` swaps directions).
    if multi_head:
        assert C % 2 == 0, "multi_head requires an even number of channels"
        half = C // 2
        groups = [(0, half, reverse), (half, half, not reverse)]   # (offset, n, flip)
    else:
        groups = [(0, C, reverse)]

    group_w2, group_b2, group_flip, group_sizes = [], [], [], []
    for off, n, flip in groups:
        w2 = jnp.concatenate([params["w2z"].T[off:off + n],
                              params["w2f"].T[off:off + n]], axis=0)      # (2n, C)
        b2 = jnp.concatenate([params["b2z"][0, off:off + n],
                              params["b2f"][0, off:off + n]])[:, None]    # (2n, 1)
        group_w2.append(w2)
        group_b2.append(b2)
        group_flip.append(flip)
        group_sizes.append(n)

    outs = _fused_scan(x_s, wa, ba, group_w2, group_b2,
                       group_flip, group_sizes, t_s)
    y_dcs = outs[0] if len(outs) == 1 else jnp.concatenate(outs, axis=1)  # (D, C, S_pad)
    y_dcs = y_dcs[:, :, :S]
    y = jnp.transpose(y_dcs.reshape(D, C, B, H, W), (2, 1, 0, 3, 4))      # (B,C,D,H,W)
    return y


# -----------------------------------------------------------------------------
# Pure-JAX reference (mirrors the PyTorch module) for correctness checking.
# -----------------------------------------------------------------------------
def _conv1(x, w, b):
    # x: (B, C, D, H, W), w: (Cin, Cout), b: (1, Cout)
    return jnp.einsum("bcdhw,ck->bkdhw", x, w) + b[0][None, :, None, None, None]


def mhrsa_ref(x, params, multi_head=True, reverse=False):
    B, C, D, H, W = x.shape
    Z = jnp.tanh(_conv1(jnp.tanh(_conv1(x, params["w1z"], params["b1z"])),
                        params["w2z"], params["b2z"]))
    Fg = jax.nn.sigmoid(_conv1(jnp.tanh(_conv1(x, params["w1f"], params["b1f"])),
                               params["w2f"], params["b2f"]))
    half = C // 2
    if multi_head:
        Z = jnp.concatenate([Z[:, :half], jnp.flip(Z[:, half:], axis=2)], axis=1)
        Fg = jnp.concatenate([Fg[:, :half], jnp.flip(Fg[:, half:], axis=2)], axis=1)

    ds = range(D) if not reverse else range(D - 1, -1, -1)
    h = None
    hs = [None] * D
    for d in ds:
        z = Z[:, :, d]
        f = Fg[:, :, d]
        h = (1 - f) * z if h is None else f * h + (1 - f) * z
        hs[d] = h
    y = jnp.stack(hs, axis=2)
    if multi_head:
        y = jnp.concatenate([y[:, :half], jnp.flip(y[:, half:], axis=2)], axis=1)
    return y


# -----------------------------------------------------------------------------
def make_params(key, C):
    keys = jax.random.split(key, 8)
    scale = 1.0 / jnp.sqrt(C)

    def w(k):
        return jax.random.normal(k, (C, C), jnp.float32) * scale

    def b(k):
        return jax.random.normal(k, (1, C), jnp.float32) * 0.1

    return {
        "w1z": w(keys[0]), "b1z": b(keys[1]),
        "w2z": w(keys[2]), "b2z": b(keys[3]),
        "w1f": w(keys[4]), "b1f": b(keys[5]),
        "w2f": w(keys[6]), "b2f": b(keys[7]),
    }


if __name__ == "__main__":
    B, C, D, H, W = 2, 4, 8, 8, 8  # (batch, channels, spectral/depth, height, width)
    key = jax.random.PRNGKey(0)
    k_x, k_p = jax.random.split(key)
    x = jax.random.normal(k_x, (B, C, D, H, W), jnp.float32)
    params = make_params(k_p, C)

    y = mhrsa_forward(x, params, multi_head=True, reverse=False)
    y = jax.block_until_ready(y)
    assert y.shape == (B, C, D, H, W)
    y_ref = mhrsa_ref(x, params, multi_head=True, reverse=False)
    assert jnp.allclose(y, y_ref, atol=1e-5, rtol=1e-5), "mismatch vs reference"

    # Extra semantic checks: reverse scan and single-head variants.
    for mh, rev in ((True, True), (False, False), (False, True)):
        yk = jax.block_until_ready(mhrsa_forward(x, params, multi_head=mh, reverse=rev))
        yr = mhrsa_ref(x, params, multi_head=mh, reverse=rev)
        assert jnp.allclose(yk, yr, atol=1e-5, rtol=1e-5), f"mismatch mh={mh} rev={rev}"

    print("KERNEL_OK")
</pallas_src>

<mosaic_0001>
module attributes {stable_mosaic.version = 11 : i64} {
  func.func @_mhrsa_fused_kernel(%arg0: i32, %arg1: i32, %arg2: memref<1x4x128xf32, #tpu.memory_space<vmem>>, %arg3: memref<1x4x128xf32, #tpu.memory_space<vmem>>, %arg4: memref<8x4xf32, #tpu.memory_space<vmem>>, %arg5: memref<8x1xf32, #tpu.memory_space<vmem>>, %arg6: memref<4x4xf32, #tpu.memory_space<vmem>>, %arg7: memref<4x1xf32, #tpu.memory_space<vmem>>, %arg8: memref<4x4xf32, #tpu.memory_space<vmem>>, %arg9: memref<4x1xf32, #tpu.memory_space<vmem>>, %arg10: memref<1x2x128xf32, #tpu.memory_space<vmem>>, %arg11: memref<1x2x128xf32, #tpu.memory_space<vmem>>, %arg12: memref<2x128xf32, #tpu.memory_space<vmem>>, %arg13: memref<2x128xf32, #tpu.memory_space<vmem>>) attributes {dimension_semantics = [#tpu.dimension_semantics<parallel>, #tpu.dimension_semantics<arbitrary>], iteration_bounds = array<i64: 1, 8>, scalar_prefetch = 0 : i64, scratch_operands = 2 : i64, tpu.core_type = #tpu.core_type<tc>, window_params = [{transform_indices = @transform_0, window_bounds = array<i64: 1, 4, 128>}, {transform_indices = @transform_1, window_bounds = array<i64: 1, 4, 128>}, {pipeline_mode = #tpu.pipeline_mode<synchronous>, transform_indices = @transform_2, window_bounds = array<i64: 8, 4>}, {pipeline_mode = #tpu.pipeline_mode<synchronous>, transform_indices = @transform_3, window_bounds = array<i64: 8, 1>}, {pipeline_mode = #tpu.pipeline_mode<synchronous>, transform_indices = @transform_4, window_bounds = array<i64: 4, 4>}, {pipeline_mode = #tpu.pipeline_mode<synchronous>, transform_indices = @transform_5, window_bounds = array<i64: 4, 1>}, {pipeline_mode = #tpu.pipeline_mode<synchronous>, transform_indices = @transform_6, window_bounds = array<i64: 4, 4>}, {pipeline_mode = #tpu.pipeline_mode<synchronous>, transform_indices = @transform_7, window_bounds = array<i64: 4, 1>}, {transform_indices = @transform_8, window_bounds = array<i64: 1, 2, 128>}, {transform_indices = @transform_9, window_bounds = array<i64: 1, 2, 128>}]} {
    %c0_i32 = arith.constant 0 : i32
    %0 = arith.cmpi eq, %arg1, %c0_i32 : i32
    %1 = arith.extui %0 : i1 to i32
    %c0_i32_0 = arith.constant 0 : i32
    %2 = arith.cmpi ne, %1, %c0_i32_0 : i32
    scf.if %2 {
      %cst_45 = arith.constant 0.000000e+00 : f32
      %79 = vector.broadcast %cst_45 : f32 to vector<2x128xf32>
      %c0_46 = arith.constant 0 : index
      %c0_47 = arith.constant 0 : index
      %80 = vector.load %arg12[%c0_46, %c0_47] : memref<2x128xf32, #tpu.memory_space<vmem>>, vector<2x128xf32>
      tpu.vector_store %arg12[%c0_46, %c0_47], %79 {strides = array<i32>} : memref<2x128xf32, #tpu.memory_space<vmem>>, vector<2x128xf32>,
      %cst_48 = arith.constant 0.000000e+00 : f32
      %81 = vector.broadcast %cst_48 : f32 to vector<2x128xf32>
      %c0_49 = arith.constant 0 : index
      %c0_50 = arith.constant 0 : index
      %82 = vector.load %arg13[%c0_49, %c0_50] : memref<2x128xf32, #tpu.memory_space<vmem>>, vector<2x128xf32>
      tpu.vector_store %arg13[%c0_49, %c0_50], %81 {strides = array<i32>} : memref<2x128xf32, #tpu.memory_space<vmem>>, vector<2x128xf32>,
    } else {
    }
    %c0 = arith.constant 0 : index
    %c0_1 = arith.constant 0 : index
    %c0_2 = arith.constant 0 : index
    %3 = vector.load %arg2[%c0, %c0_1, %c0_2] : memref<1x4x128xf32, #tpu.memory_space<vmem>>, vector<1x4x128xf32>
    %4 = vector.shape_cast %3 : vector<1x4x128xf32> to vector<4x128xf32>
    %c0_3 = arith.constant 0 : index
    %c0_4 = arith.constant 0 : index
    %5 = vector.load %arg4[%c0_3, %c0_4] : memref<8x4xf32, #tpu.memory_space<vmem>>, vector<8x4xf32>
    %cst = arith.constant dense<0.000000e+00> : vector<8x128xf32>
    %6 = tpu.matmul %5, %4, %cst {dimension_numbers = #tpu.dot_dimension_numbers<[1], [0], [0], [1], [0, 0, 1, 1], [], []>} : vector<8x4xf32>, vector<4x128xf32>, vector<8x128xf32> -> vector<8x128xf32>
    %c0_5 = arith.constant 0 : index
    %c0_6 = arith.constant 0 : index
    %7 = vector.load %arg5[%c0_5, %c0_6] : memref<8x1xf32, #tpu.memory_space<vmem>>, vector<8x1xf32>
    %8 = vector.broadcast %7 : vector<8x1xf32> to vector<8x128xf32>
    %9 = arith.addf %6, %8 : vector<8x128xf32>
    %10 = math.tanh %9 : vector<8x128xf32>
    %c0_7 = arith.constant 0 : index
    %c0_8 = arith.constant 0 : index
    %11 = vector.load %arg6[%c0_7, %c0_8] : memref<4x4xf32, #tpu.memory_space<vmem>>, vector<4x4xf32>
    %c0_9 = arith.constant 0 : index
    %c0_10 = arith.constant 0 : index
    %12 = vector.load %arg7[%c0_9, %c0_10] : memref<4x1xf32, #tpu.memory_space<vmem>>, vector<4x1xf32>
    %13 = vector.extract_strided_slice %11 {offsets = [0, 0], sizes = [2, 4], strides = [1, 1]} : vector<4x4xf32> to vector<2x4xf32>
    %14 = vector.extract_strided_slice %10 {offsets = [0, 0], sizes = [4, 128], strides = [1, 1]} : vector<8x128xf32> to vector<4x128xf32>
    %cst_11 = arith.constant dense<0.000000e+00> : vector<2x128xf32>
    %15 = tpu.matmul %13, %14, %cst_11 {dimension_numbers = #tpu.dot_dimension_numbers<[1], [0], [0], [1], [0, 0, 1, 1], [], []>} : vector<2x4xf32>, vector<4x128xf32>, vector<2x128xf32> -> vector<2x128xf32>
    %16 = vector.extract_strided_slice %12 {offsets = [0, 0], sizes = [2, 1], strides = [1, 1]} : vector<4x1xf32> to vector<2x1xf32>
    %17 = vector.broadcast %16 : vector<2x1xf32> to vector<2x128xf32>
    %18 = arith.addf %15, %17 : vector<2x128xf32>
    %19 = math.tanh %18 : vector<2x128xf32>
    %20 = vector.extract_strided_slice %11 {offsets = [2, 0], sizes = [2, 4], strides = [1, 1]} : vector<4x4xf32> to vector<2x4xf32>
    %21 = vector.extract_strided_slice %10 {offsets = [4, 0], sizes = [4, 128], strides = [1, 1]} : vector<8x128xf32> to vector<4x128xf32>
    %cst_12 = arith.constant dense<0.000000e+00> : vector<2x128xf32>
    %22 = tpu.matmul %20, %21, %cst_12 {dimension_numbers = #tpu.dot_dimension_numbers<[1], [0], [0], [1], [0, 0, 1, 1], [], []>} : vector<2x4xf32>, vector<4x128xf32>, vector<2x128xf32> -> vector<2x128xf32>
    %23 = vector.extract_strided_slice %12 {offsets = [2, 0], sizes = [2, 1], strides = [1, 1]} : vector<4x1xf32> to vector<2x1xf32>
    %24 = vector.broadcast %23 : vector<2x1xf32> to vector<2x128xf32>
    %25 = arith.addf %22, %24 : vector<2x128xf32>
    %26 = arith.negf %25 : vector<2x128xf32>
    %27 = math.exp %26 : vector<2x128xf32>
    %cst_13 = arith.constant 1.000000e+00 : f32
    %28 = vector.broadcast %cst_13 : f32 to vector<2x128xf32>
    %29 = arith.addf %28, %27 : vector<2x128xf32>
    %30 = arith.divf %28, %29 : vector<2x128xf32>
    %c0_14 = arith.constant 0 : index
    %c0_15 = arith.constant 0 : index
    %31 = vector.load %arg12[%c0_14, %c0_15] : memref<2x128xf32, #tpu.memory_space<vmem>>, vector<2x128xf32>
    %32 = arith.mulf %30, %31 : vector<2x128xf32>
    %cst_16 = arith.constant 1.000000e+00 : f32
    %33 = vector.broadcast %cst_16 : f32 to vector<2x128xf32>
    %34 = arith.subf %33, %30 : vector<2x128xf32>
    %35 = arith.mulf %34, %19 : vector<2x128xf32>
    %36 = arith.addf %32, %35 : vector<2x128xf32>
    %c0_17 = arith.constant 0 : index
    %c0_18 = arith.constant 0 : index
    %37 = vector.load %arg12[%c0_17, %c0_18] : memref<2x128xf32, #tpu.memory_space<vmem>>, vector<2x128xf32>
    tpu.vector_store %arg12[%c0_17, %c0_18], %36 {strides = array<i32>} : memref<2x128xf32, #tpu.memory_space<vmem>>, vector<2x128xf32>,
    %c0_19 = arith.constant 0 : index
    %c0_20 = arith.constant 0 : index
    %c0_21 = arith.constant 0 : index
    %38 = vector.load %arg10[%c0_19, %c0_20, %c0_21] : memref<1x2x128xf32, #tpu.memory_space<vmem>>, vector<1x2x128xf32>
    %39 = vector.shape_cast %38 : vector<1x2x128xf32> to vector<2x128xf32>
    %40 = vector.shape_cast %36 : vector<2x128xf32> to vector<1x2x128xf32>
    tpu.vector_store %arg10[%c0_19, %c0_20, %c0_21], %40 {strides = array<i32>} : memref<1x2x128xf32, #tpu.memory_space<vmem>>, vector<1x2x128xf32>,
    %c0_22 = arith.constant 0 : index
    %c0_23 = arith.constant 0 : index
    %c0_24 = arith.constant 0 : index
    %41 = vector.load %arg3[%c0_22, %c0_23, %c0_24] : memref<1x4x128xf32, #tpu.memory_space<vmem>>, vector<1x4x128xf32>
    %42 = vector.shape_cast %41 : vector<1x4x128xf32> to vector<4x128xf32>
    %c0_25 = arith.constant 0 : index
    %c0_26 = arith.constant 0 : index
    %43 = vector.load %arg4[%c0_25, %c0_26] : memref<8x4xf32, #tpu.memory_space<vmem>>, vector<8x4xf32>
    %cst_27 = arith.constant dense<0.000000e+00> : vector<8x128xf32>
    %44 = tpu.matmul %43, %42, %cst_27 {dimension_numbers = #tpu.dot_dimension_numbers<[1], [0], [0], [1], [0, 0, 1, 1], [], []>} : vector<8x4xf32>, vector<4x128xf32>, vector<8x128xf32> -> vector<8x128xf32>
    %c0_28 = arith.constant 0 : index
    %c0_29 = arith.constant 0 : index
    %45 = vector.load %arg5[%c0_28, %c0_29] : memref<8x1xf32, #tpu.memory_space<vmem>>, vector<8x1xf32>
    %46 = vector.broadcast %45 : vector<8x1xf32> to vector<8x128xf32>
    %47 = arith.addf %44, %46 : vector<8x128xf32>
    %48 = math.tanh %47 : vector<8x128xf32>
    %c0_30 = arith.constant 0 : index
    %c0_31 = arith.constant 0 : index
    %49 = vector.load %arg8[%c0_30, %c0_31] : memref<4x4xf32, #tpu.memory_space<vmem>>, vector<4x4xf32>
    %c0_32 = arith.constant 0 : index
    %c0_33 = arith.constant 0 : index
    %50 = vector.load %arg9[%c0_32, %c0_33] : memref<4x1xf32, #tpu.memory_space<vmem>>, vector<4x1xf32>
    %51 = vector.extract_strided_slice %49 {offsets = [0, 0], sizes = [2, 4], strides = [1, 1]} : vector<4x4xf32> to vector<2x4xf32>
    %52 = vector.extract_strided_slice %48 {offsets = [0, 0], sizes = [4, 128], strides = [1, 1]} : vector<8x128xf32> to vector<4x128xf32>
    %cst_34 = arith.constant dense<0.000000e+00> : vector<2x128xf32>
    %53 = tpu.matmul %51, %52, %cst_34 {dimension_numbers = #tpu.dot_dimension_numbers<[1], [0], [0], [1], [0, 0, 1, 1], [], []>} : vector<2x4xf32>, vector<4x128xf32>, vector<2x128xf32> -> vector<2x128xf32>
    %54 = vector.extract_strided_slice %50 {offsets = [0, 0], sizes = [2, 1], strides = [1, 1]} : vector<4x1xf32> to vector<2x1xf32>
    %55 = vector.broadcast %54 : vector<2x1xf32> to vector<2x128xf32>
    %56 = arith.addf %53, %55 : vector<2x128xf32>
    %57 = math.tanh %56 : vector<2x128xf32>
    %58 = vector.extract_strided_slice %49 {offsets = [2, 0], sizes = [2, 4], strides = [1, 1]} : vector<4x4xf32> to vector<2x4xf32>
    %59 = vector.extract_strided_slice %48 {offsets = [4, 0], sizes = [4, 128], strides = [1, 1]} : vector<8x128xf32> to vector<4x128xf32>
    %cst_35 = arith.constant dense<0.000000e+00> : vector<2x128xf32>
    %60 = tpu.matmul %58, %59, %cst_35 {dimension_numbers = #tpu.dot_dimension_numbers<[1], [0], [0], [1], [0, 0, 1, 1], [], []>} : vector<2x4xf32>, vector<4x128xf32>, vector<2x128xf32> -> vector<2x128xf32>
    %61 = vector.extract_strided_slice %50 {offsets = [2, 0], sizes = [2, 1], strides = [1, 1]} : vector<4x1xf32> to vector<2x1xf32>
    %62 = vector.broadcast %61 : vector<2x1xf32> to vector<2x128xf32>
    %63 = arith.addf %60, %62 : vector<2x128xf32>
    %64 = arith.negf %63 : vector<2x128xf32>
    %65 = math.exp %64 : vector<2x128xf32>
    %cst_36 = arith.constant 1.000000e+00 : f32
    %66 = vector.broadcast %cst_36 : f32 to vector<2x128xf32>
    %67 = arith.addf %66, %65 : vector<2x128xf32>
    %68 = arith.divf %66, %67 : vector<2x128xf32>
    %c0_37 = arith.constant 0 : index
    %c0_38 = arith.constant 0 : index
    %69 = vector.load %arg13[%c0_37, %c0_38] : memref<2x128xf32, #tpu.memory_space<vmem>>, vector<2x128xf32>
    %70 = arith.mulf %68, %69 : vector<2x128xf32>
    %cst_39 = arith.constant 1.000000e+00 : f32
    %71 = vector.broadcast %cst_39 : f32 to vector<2x128xf32>
    %72 = arith.subf %71, %68 : vector<2x128xf32>
    %73 = arith.mulf %72, %57 : vector<2x128xf32>
    %74 = arith.addf %70, %73 : vector<2x128xf32>
    %c0_40 = arith.constant 0 : index
    %c0_41 = arith.constant 0 : index
    %75 = vector.load %arg13[%c0_40, %c0_41] : memref<2x128xf32, #tpu.memory_space<vmem>>, vector<2x128xf32>
    tpu.vector_store %arg13[%c0_40, %c0_41], %74 {strides = array<i32>} : memref<2x128xf32, #tpu.memory_space<vmem>>, vector<2x128xf32>,
    %c0_42 = arith.constant 0 : index
    %c0_43 = arith.constant 0 : index
    %c0_44 = arith.constant 0 : index
    %76 = vector.load %arg11[%c0_42, %c0_43, %c0_44] : memref<1x2x128xf32, #tpu.memory_space<vmem>>, vector<1x2x128xf32>
    %77 = vector.shape_cast %76 : vector<1x2x128xf32> to vector<2x128xf32>
    %78 = vector.shape_cast %74 : vector<2x128xf32> to vector<1x2x128xf32>
    tpu.vector_store %arg11[%c0_42, %c0_43, %c0_44], %78 {strides = array<i32>} : memref<1x2x128xf32, #tpu.memory_space<vmem>>, vector<1x2x128xf32>,
    return
  }
  func.func @transform_0(%arg0: i32, %arg1: i32) -> (i32, i32, i32) {
    %c0_i32 = arith.constant 0 : i32
    %c0_i32_0 = arith.constant 0 : i32
    return %arg1, %c0_i32, %arg0 : i32, i32, i32
  }
  func.func @transform_1(%arg0: i32, %arg1: i32) -> (i32, i32, i32) {
    %c7_i32 = arith.constant 7 : i32
    %0 = arith.subi %c7_i32, %arg1 : i32
    %c0_i32 = arith.constant 0 : i32
    %c0_i32_0 = arith.constant 0 : i32
    return %0, %c0_i32, %arg0 : i32, i32, i32
  }
  func.func @transform_2(%arg0: i32, %arg1: i32) -> (i32, i32) {
    %c0_i32 = arith.constant 0 : i32
    %c0_i32_0 = arith.constant 0 : i32
    %c0_i32_1 = arith.constant 0 : i32
    return %c0_i32, %c0_i32_0 : i32, i32
  }
  func.func @transform_3(%arg0: i32, %arg1: i32) -> (i32, i32) {
    %c0_i32 = arith.constant 0 : i32
    %c0_i32_0 = arith.constant 0 : i32
    %c0_i32_1 = arith.constant 0 : i32
    return %c0_i32, %c0_i32_0 : i32, i32
  }
  func.func @transform_4(%arg0: i32, %arg1: i32) -> (i32, i32) {
    %c0_i32 = arith.constant 0 : i32
    %c0_i32_0 = arith.constant 0 : i32
    %c0_i32_1 = arith.constant 0 : i32
    return %c0_i32, %c0_i32_0 : i32, i32
  }
  func.func @transform_5(%arg0: i32, %arg1: i32) -> (i32, i32) {
    %c0_i32 = arith.constant 0 : i32
    %c0_i32_0 = arith.constant 0 : i32
    %c0_i32_1 = arith.constant 0 : i32
    return %c0_i32, %c0_i32_0 : i32, i32
  }
  func.func @transform_6(%arg0: i32, %arg1: i32) -> (i32, i32) {
    %c0_i32 = arith.constant 0 : i32
    %c0_i32_0 = arith.constant 0 : i32
    %c0_i32_1 = arith.constant 0 : i32
    return %c0_i32, %c0_i32_0 : i32, i32
  }
  func.func @transform_7(%arg0: i32, %arg1: i32) -> (i32, i32) {
    %c0_i32 = arith.constant 0 : i32
    %c0_i32_0 = arith.constant 0 : i32
    %c0_i32_1 = arith.constant 0 : i32
    return %c0_i32, %c0_i32_0 : i32, i32
  }
  func.func @transform_8(%arg0: i32, %arg1: i32) -> (i32, i32, i32) {
    %c0_i32 = arith.constant 0 : i32
    %c0_i32_0 = arith.constant 0 : i32
    return %arg1, %c0_i32, %arg0 : i32, i32, i32
  }
  func.func @transform_9(%arg0: i32, %arg1: i32) -> (i32, i32, i32) {
    %c7_i32 = arith.constant 7 : i32
    %0 = arith.subi %c7_i32, %arg1 : i32
    %c0_i32 = arith.constant 0 : i32
    %c0_i32_0 = arith.constant 0 : i32
    return %0, %c0_i32, %arg0 : i32, i32, i32
  }
}

</mosaic_0001>

<llo_original>
// kernel: tpu_custom_call.1
$region0: #{tpu_custom_call.1}
  #allocation0 [shape = 'u32[]', space=smem, size = 0x4, offset = 0x4, fixed_abs, tag = 'smem constant byte address 0x4 - core index']
  #allocation1 [shape = 'u32[144,128]{1,0:T(1,128)}', space=vmem, size = 0x12000, scoped, tag = 'internal scratch']
  #allocation2 [shape = 'f32[2,128]{1,0:T(2,128)}', space=vmem, size = 0x400, scoped, tag = 'scratch operand']
  #allocation3 [shape = 'f32[2,128]{1,0:T(2,128)}', space=vmem, size = 0x400, scoped, tag = 'scratch operand']
  %s0 = inlined_call_operand.hbm [shape: f32[8,4,128], index: 0, kind: input, shape index: {}]
  %s1 = inlined_call_operand.vmem [shape: f32[8,4,128], index: 1, kind: input, shape index: {}]
  %s2 = inlined_call_operand.vmem [shape: f32[8,4], index: 2, kind: input, shape index: {}]
  %s3 = inlined_call_operand.vmem [shape: f32[8,1], index: 3, kind: input, shape index: {}]
  %s4 = inlined_call_operand.vmem [shape: f32[4,4], index: 4, kind: input, shape index: {}]
  %s5 = inlined_call_operand.vmem [shape: f32[4,1], index: 5, kind: input, shape index: {}]
  %s6 = inlined_call_operand.vmem [shape: f32[4,4], index: 6, kind: input, shape index: {}]
  %s7 = inlined_call_operand.vmem [shape: f32[4,1], index: 7, kind: input, shape index: {}]
  %s8 = inlined_call_operand.hbm [shape: f32[8,2,128], index: 8, kind: output, shape index: {0}]
  %s9 = inlined_call_operand.hbm [shape: f32[8,2,128], index: 9, kind: output, shape index: {1}]
  %10 = xla_tuple %s8, %s9
  %s11 = sld [smem:[#allocation0]]
  $region81: #{tpu_custom_call.1} parent=0
    _
  %s13 = ssub.s32 1, %s11
  %s14 = scalar_select 0, %s13, %s11
  $region1: #{tpu_custom_call.1} parent=0
    #allocation4 [shape = 'u8[4096]{0}', space=vmem, size = 0x1000, scoped, tag = 'input window, operand 0']
    #allocation5 [shape = 's32[2]{0}', space=sflag, size = 0x8, scoped, tag = 'scoped memory for tpu_custom_call.1']
    #allocation6 [shape = 's32[2]{0}', space=sflag, size = 0x8, scoped, tag = 'scoped memory for tpu_custom_call.1']
    #allocation7 [shape = 'u8[2048]{0}', space=vmem, size = 0x800, scoped, tag = 'output window, operand 0']
    #allocation8 [shape = 'u8[2048]{0}', space=vmem, size = 0x800, scoped, tag = 'output window, operand 1']
    #allocation9 [shape = 's32[2]{0}', space=sflag, size = 0x8, scoped, tag = 'scoped memory for tpu_custom_call.1']
    %15 = vsyncpa [#allocation5], 0
    %s16 = scalar_lea.sflag [#allocation5], 1
    %17 = vsyncpa %s16, 0
    %18 = vsyncpa [#allocation6], 0
    %s19 = scalar_lea.sflag [#allocation6], 1
    %20 = vsyncpa %s19, 0
    %21 = vsyncpa [#allocation9], 0
    %s22 = scalar_lea.sflag [#allocation9], 1
    %23 = vsyncpa %s22, 0
    loop: start=0, step=1, limit=10
    $region2: #{tpu_custom_call.1} parent=1 // loop_pre_header
      _
    $region3: #{tpu_custom_call.1} parent=1 // loop_header
      %s25 = sphi 0, %s29
      %p26 = scmp.ge.s32.totalorder %s25, 10
      %s32 = sphi 0, %s44
      %s33 = sphi 0, %s40
      %s34 = sphi 0, %s32
      %s35 = sphi 0, %s33
      %s36 = sphi 0, %s34
      %s37 = sphi 0, %s35
      %s49 = sphi 0, %s51
      %s52 = sphi 0, %s49
      %s53 = sphi 0, %s52
      %s69 = sphi 0, %s53
      %s79 = sphi 0, %s81
      %s82 = sphi 0, %s79
      %s83 = sphi 0, %s82
      %s99 = sphi 0, %s83
      %s103 = sphi 0, %s103
      %s105 = sphi 0, %s103
      %s106 = sphi 0, %s105
      %s120 = sphi 0, %s106
      %s124 = sphi 0, %s124
      %s126 = sphi 0, %s124
      %s127 = sphi 0, %s126
      %s141 = sphi 0, %s127
      %s145 = sphi 0, %s145
      %s147 = sphi 0, %s145
      %s148 = sphi 0, %s147
      %s162 = sphi 0, %s148
      %s166 = sphi 0, %s166
      %s168 = sphi 0, %s166
      %s169 = sphi 0, %s168
      %s183 = sphi 0, %s169
      %s187 = sphi 0, %s187
      %s189 = sphi 0, %s187
      %s190 = sphi 0, %s189
      %s204 = sphi 0, %s190
      %s208 = sphi 0, %s208
      %s210 = sphi 0, %s208
      %s211 = sphi 0, %s210
      %s225 = sphi 0, %s211
      %s233 = sphi 0, %s235
      %s236 = sphi 0, %s233
      %s237 = sphi 0, %s236
      %s253 = sphi 0, %s237
      %s263 = sphi 0, %s265
      %s266 = sphi 0, %s263
      %s267 = sphi 0, %s266
      %s283 = sphi 0, %s267
    $region4: #{tpu_custom_call.1} parent=1 // loop_header_branch
      %28 = sbr.rel (%p26) target = $region8
    $region5: #{tpu_custom_call.1} parent=1 // loop_body
      %s30 = ssub.s32 %s25, 1
      %s31 = ssub.s32 %s25, 2
      %s38 = sadd.s32 1, %s33
      %p39 = scmp.ge.s32.totalorder %s38, 8
      %s40 = scalar_select %p39, 0, %s38
      %s41 = sadd.s32 1, %s32
      %s42 = scalar_select %p39, %s41, %s32
      %p43 = scmp.ge.s32.totalorder %s42, 1
      %s44 = scalar_select %p43, 0, %s42
      %s45 = ssub.s32 %s33, %s40
      %s46 = ssub.s32 %s32, %s44
      %s47 = sor.u32 %s45, %s46
      %p48 = scmp.eq.s32.totalorder %s47, 0
      %s50 = sadd.s32 %s49, 1
      %s51 = scalar_select %p48, %s49, %s50
      %p54 = pneg %p48
      %p55 = scmp.eq.s32.totalorder %s25, 7
      %p56 = por %p54, %p55
      %p57 = scmp.ne.s32.totalorder %s49, %s52
      %p58 = scmp.eq.s32.totalorder %s25, 0
      %p59 = por %p57, %p58
      %p60 = scmp.ne.s32.totalorder %s49, %s52
      %p61 = scmp.eq.s32.totalorder %s30, 7
      %p62 = por %p60, %p61
      %p63 = scmp.ne.s32.totalorder %s52, %s53
      %p64 = scmp.eq.s32.totalorder %s30, 0
      %p65 = por %p63, %p64
      %p66 = scmp.ne.s32.totalorder %s52, %s53
      %p67 = scmp.eq.s32.totalorder %s31, 7
      %p68 = por %p66, %p67
      %p70 = scmp.ne.s32.totalorder %s53, %s69
      %p71 = scmp.eq.s32.totalorder %s31, 0
      %p72 = por %p70, %p71
      %s73 = ssub.s32 7, %s33
      %s74 = ssub.s32 7, %s40
      %s75 = ssub.s32 %s73, %s74
      %s76 = ssub.s32 %s32, %s44
      %s77 = sor.u32 %s75, %s76
      %p78 = scmp.eq.s32.totalorder %s77, 0
      %s80 = sadd.s32 %s79, 1
      %s81 = scalar_select %p78, %s79, %s80
      %p84 = pneg %p78
      %p85 = scmp.eq.s32.totalorder %s25, 7
      %p86 = por %p84, %p85
      %p87 = scmp.ne.s32.totalorder %s79, %s82
      %p88 = scmp.eq.s32.totalorder %s25, 0
      %p89 = por %p87, %p88
      %p90 = scmp.ne.s32.totalorder %s79, %s82
      %p91 = scmp.eq.s32.totalorder %s30, 7
      %p92 = por %p90, %p91
      %p93 = scmp.ne.s32.totalorder %s82, %s83
      %p94 = scmp.eq.s32.totalorder %s30, 0
      %p95 = por %p93, %p94
      %p96 = scmp.ne.s32.totalorder %s82, %s83
      %p97 = scmp.eq.s32.totalorder %s31, 7
      %p98 = por %p96, %p97
      %p100 = scmp.ne.s32.totalorder %s83, %s99
      %p101 = scmp.eq.s32.totalorder %s31, 0
      %p102 = por %p100, %p101
      %s104 = sadd.s32 %s103, 1
      %p107 = scmp.eq.s32.totalorder %s25, 7
      %p108 = scmp.ne.s32.totalorder %s103, %s105
      %p109 = scmp.eq.s32.totalorder %s25, 0
      %p110 = por %p108, %p109
      %p111 = scmp.ne.s32.totalorder %s103, %s105
      %p112 = scmp.eq.s32.totalorder %s30, 7
      %p113 = por %p111, %p112
      %p114 = scmp.ne.s32.totalorder %s105, %s106
      %p115 = scmp.eq.s32.totalorder %s30, 0
      %p116 = por %p114, %p115
      %p117 = scmp.ne.s32.totalorder %s105, %s106
      %p118 = scmp.eq.s32.totalorder %s31, 7
      %p119 = por %p117, %p118
      %p121 = scmp.ne.s32.totalorder %s106, %s120
      %p122 = scmp.eq.s32.totalorder %s31, 0
      %p123 = por %p121, %p122
      %s125 = sadd.s32 %s124, 1
      %p128 = scmp.eq.s32.totalorder %s25, 7
      %p129 = scmp.ne.s32.totalorder %s124, %s126
      %p130 = scmp.eq.s32.totalorder %s25, 0
      %p131 = por %p129, %p130
      %p132 = scmp.ne.s32.totalorder %s124, %s126
      %p133 = scmp.eq.s32.totalorder %s30, 7
      %p134 = por %p132, %p133
      %p135 = scmp.ne.s32.totalorder %s126, %s127
      %p136 = scmp.eq.s32.totalorder %s30, 0
      %p137 = por %p135, %p136
      %p138 = scmp.ne.s32.totalorder %s126, %s127
      %p139 = scmp.eq.s32.totalorder %s31, 7
      %p140 = por %p138, %p139
      %p142 = scmp.ne.s32.totalorder %s127, %s141
      %p143 = scmp.eq.s32.totalorder %s31, 0
      %p144 = por %p142, %p143
      %s146 = sadd.s32 %s145, 1
      %p149 = scmp.eq.s32.totalorder %s25, 7
      %p150 = scmp.ne.s32.totalorder %s145, %s147
      %p151 = scmp.eq.s32.totalorder %s25, 0
      %p152 = por %p150, %p151
      %p153 = scmp.ne.s32.totalorder %s145, %s147
      %p154 = scmp.eq.s32.totalorder %s30, 7
      %p155 = por %p153, %p154
      %p156 = scmp.ne.s32.totalorder %s147, %s148
      %p157 = scmp.eq.s32.totalorder %s30, 0
      %p158 = por %p156, %p157
      %p159 = scmp.ne.s32.totalorder %s147, %s148
      %p160 = scmp.eq.s32.totalorder %s31, 7
      %p161 = por %p159, %p160
      %p163 = scmp.ne.s32.totalorder %s148, %s162
      %p164 = scmp.eq.s32.totalorder %s31, 0
      %p165 = por %p163, %p164
      %s167 = sadd.s32 %s166, 1
      %p170 = scmp.eq.s32.totalorder %s25, 7
      %p171 = scmp.ne.s32.totalorder %s166, %s168
      %p172 = scmp.eq.s32.totalorder %s25, 0
      %p173 = por %p171, %p172
      %p174 = scmp.ne.s32.totalorder %s166, %s168
      %p175 = scmp.eq.s32.totalorder %s30, 7
      %p176 = por %p174, %p175
      %p177 = scmp.ne.s32.totalorder %s168, %s169
      %p178 = scmp.eq.s32.totalorder %s30, 0
      %p179 = por %p177, %p178
      %p180 = scmp.ne.s32.totalorder %s168, %s169
      %p181 = scmp.eq.s32.totalorder %s31, 7
      %p182 = por %p180, %p181
      %p184 = scmp.ne.s32.totalorder %s169, %s183
      %p185 = scmp.eq.s32.totalorder %s31, 0
      %p186 = por %p184, %p185
      %s188 = sadd.s32 %s187, 1
      %p191 = scmp.eq.s32.totalorder %s25, 7
      %p192 = scmp.ne.s32.totalorder %s187, %s189
      %p193 = scmp.eq.s32.totalorder %s25, 0
      %p194 = por %p192, %p193
      %p195 = scmp.ne.s32.totalorder %s187, %s189
      %p196 = scmp.eq.s32.totalorder %s30, 7
      %p197 = por %p195, %p196
      %p198 = scmp.ne.s32.totalorder %s189, %s190
      %p199 = scmp.eq.s32.totalorder %s30, 0
      %p200 = por %p198, %p199
      %p201 = scmp.ne.s32.totalorder %s189, %s190
      %p202 = scmp.eq.s32.totalorder %s31, 7
      %p203 = por %p201, %p202
      %p205 = scmp.ne.s32.totalorder %s190, %s204
      %p206 = scmp.eq.s32.totalorder %s31, 0
      %p207 = por %p205, %p206
      %s209 = sadd.s32 %s208, 1
      %p212 = scmp.eq.s32.totalorder %s25, 7
      %p213 = scmp.ne.s32.totalorder %s208, %s210
      %p214 = scmp.eq.s32.totalorder %s25, 0
      %p215 = por %p213, %p214
      %p216 = scmp.ne.s32.totalorder %s208, %s210
      %p217 = scmp.eq.s32.totalorder %s30, 7
      %p218 = por %p216, %p217
      %p219 = scmp.ne.s32.totalorder %s210, %s211
      %p220 = scmp.eq.s32.totalorder %s30, 0
      %p221 = por %p219, %p220
      %p222 = scmp.ne.s32.totalorder %s210, %s211
      %p223 = scmp.eq.s32.totalorder %s31, 7
      %p224 = por %p222, %p223
      %p226 = scmp.ne.s32.totalorder %s211, %s225
      %p227 = scmp.eq.s32.totalorder %s31, 0
      %p228 = por %p226, %p227
      %s229 = ssub.s32 %s33, %s40
      %s230 = ssub.s32 %s32, %s44
      %s231 = sor.u32 %s229, %s230
      %p232 = scmp.eq.s32.totalorder %s231, 0
      %s234 = sadd.s32 %s233, 1
      %s235 = scalar_select %p232, %s233, %s234
      %p238 = pneg %p232
      %p239 = scmp.eq.s32.totalorder %s25, 7
      %p240 = por %p238, %p239
      %p241 = scmp.ne.s32.totalorder %s233, %s236
      %p242 = scmp.eq.s32.totalorder %s25, 0
      %p243 = por %p241, %p242
      %p244 = scmp.ne.s32.totalorder %s233, %s236
      %p245 = scmp.eq.s32.totalorder %s30, 7
      %p246 = por %p244, %p245
      %p247 = scmp.ne.s32.totalorder %s236, %s237
      %p248 = scmp.eq.s32.totalorder %s30, 0
      %p249 = por %p247, %p248
      %p250 = scmp.ne.s32.totalorder %s236, %s237
      %p251 = scmp.eq.s32.totalorder %s31, 7
      %p252 = por %p250, %p251
      %p254 = scmp.ne.s32.totalorder %s237, %s253
      %p255 = scmp.eq.s32.totalorder %s31, 0
      %p256 = por %p254, %p255
      %s257 = ssub.s32 7, %s33
      %s258 = ssub.s32 7, %s40
      %s259 = ssub.s32 %s257, %s258
      %s260 = ssub.s32 %s32, %s44
      %s261 = sor.u32 %s259, %s260
      %p262 = scmp.eq.s32.totalorder %s261, 0
      %s264 = sadd.s32 %s263, 1
      %s265 = scalar_select %p262, %s263, %s264
      %p268 = pneg %p262
      %p269 = scmp.eq.s32.totalorder %s25, 7
      %p270 = por %p268, %p269
      %p271 = scmp.ne.s32.totalorder %s263, %s266
      %p272 = scmp.eq.s32.totalorder %s25, 0
      %p273 = por %p271, %p272
      %p274 = scmp.ne.s32.totalorder %s263, %s266
      %p275 = scmp.eq.s32.totalorder %s30, 7
      %p276 = por %p274, %p275
      %p277 = scmp.ne.s32.totalorder %s266, %s267
      %p278 = scmp.eq.s32.totalorder %s30, 0
      %p279 = por %p277, %p278
      %p280 = scmp.ne.s32.totalorder %s266, %s267
      %p281 = scmp.eq.s32.totalorder %s31, 7
      %p282 = por %p280, %p281
      %p284 = scmp.ne.s32.totalorder %s267, %s283
      %p285 = scmp.eq.s32.totalorder %s31, 0
      %p286 = por %p284, %p285
      %p287 = scmp.le.s32.totalorder 1, %s25
      %p288 = scmp.lt.s32.totalorder %s25, 9
      %p289 = pnand %p287, %p288
      %p290 = pneg %p289
      // Predicated region
      $region9: #{tpu_custom_call.1} parent=5 // pred_check
        _
      $region10: #{tpu_custom_call.1} parent=5 // pred_check_branch
        %292 = sbr.rel (%p289) target = $region12
      $region11: #{tpu_custom_call.1} parent=5 // pred_region
        %s293 = ssub.s32 %s25, 1
        // Predicated region
        $region13: #{tpu_custom_call.1} parent=11 // pred_check
          %p294 = pneg %p116
        $region14: #{tpu_custom_call.1} parent=11 // pred_check_branch
          %296 = sbr.rel (%p294) target = $region16
        $region15: #{tpu_custom_call.1} parent=11 // pred_region
          _
        $region16: #{tpu_custom_call.1} parent=11 // pred_fallthru
          _
        // Predicated region
        $region17: #{tpu_custom_call.1} parent=11 // pred_check
          %p297 = pneg %p137
        $region18: #{tpu_custom_call.1} parent=11 // pred_check_branch
          %299 = sbr.rel (%p297) target = $region20
        $region19: #{tpu_custom_call.1} parent=11 // pred_region
          _
        $region20: #{tpu_custom_call.1} parent=11 // pred_fallthru
          _
        // Predicated region
        $region21: #{tpu_custom_call.1} parent=11 // pred_check
          %p300 = pneg %p158
        $region22: #{tpu_custom_call.1} parent=11 // pred_check_branch
          %302 = sbr.rel (%p300) target = $region24
        $region23: #{tpu_custom_call.1} parent=11 // pred_region
          _
        $region24: #{tpu_custom_call.1} parent=11 // pred_fallthru
          _
        // Predicated region
        $region25: #{tpu_custom_call.1} parent=11 // pred_check
          %p303 = pneg %p179
        $region26: #{tpu_custom_call.1} parent=11 // pred_check_branch
          %305 = sbr.rel (%p303) target = $region28
        $region27: #{tpu_custom_call.1} parent=11 // pred_region
          _
        $region28: #{tpu_custom_call.1} parent=11 // pred_fallthru
          _
        // Predicated region
        $region29: #{tpu_custom_call.1} parent=11 // pred_check
          %p306 = pneg %p200
        $region30: #{tpu_custom_call.1} parent=11 // pred_check_branch
          %308 = sbr.rel (%p306) target = $region32
        $region31: #{tpu_custom_call.1} parent=11 // pred_region
          _
        $region32: #{tpu_custom_call.1} parent=11 // pred_fallthru
          _
        // Predicated region
        $region33: #{tpu_custom_call.1} parent=11 // pred_check
          %p309 = pneg %p221
        $region34: #{tpu_custom_call.1} parent=11 // pred_check_branch
          %311 = sbr.rel (%p309) target = $region36
        $region35: #{tpu_custom_call.1} parent=11 // pred_region
          _
        $region36: #{tpu_custom_call.1} parent=11 // pred_fallthru
          _
      $region12: #{tpu_custom_call.1} parent=5 // pred_fallthru
        _
      %p312 = scmp.lt.s32.totalorder %s25, 8
      // Predicated region
      $region37: #{tpu_custom_call.1} parent=5 // pred_check
        %p313 = pneg %p312
      $region38: #{tpu_custom_call.1} parent=5 // pred_check_branch
        %315 = sbr.rel (%p313) target = $region40
      $region39: #{tpu_custom_call.1} parent=5 // pred_region
        // Predicated region
        $region41: #{tpu_custom_call.1} parent=39 // pred_check
          %p316 = pneg %p59
        $region42: #{tpu_custom_call.1} parent=39 // pred_check_branch
          %318 = sbr.rel (%p316) target = $region44
        $region43: #{tpu_custom_call.1} parent=39 // pred_region
          %s319 = sand.u32 %s49, 1
          %s320 = scalar_lea.sflag [#allocation5], %s319
          %s321 = sand.u32 %s49, 1
          %s322 = smul.addr %s321, 4
          %s323 = scalar_lea.vmem [#allocation4], %s322
          %s325 = ssub.s32 64, 64
          %326 = vsyncadd %s320, %s325
          %s327 = sadd.s32 %s32, %s33
          %s328 = smul.addr %s327, 64
          %s329 = scalar_lea.hbm %s0, %s328
          %s331 = sshll.u32 %s323, 4
          %s332 = int_to_ptr.vmem [resolvable:$true] %s331
          %334 = dma.hbm_to_vmem [thread:$0]  %s329, 64, %s332, %s320
        $region44: #{tpu_custom_call.1} parent=39 // pred_fallthru
          _
        // Predicated region
        $region45: #{tpu_custom_call.1} parent=39 // pred_check
          %p335 = pneg %p89
        $region46: #{tpu_custom_call.1} parent=39 // pred_check_branch
          %337 = sbr.rel (%p335) target = $region48
        $region47: #{tpu_custom_call.1} parent=39 // pred_region
          %s338 = ssub.s32 7, %s33
          %p339 = scmp.lt.s32.totalorder %s338, 7
          %s340 = scalar_select %p339, %s338, 7
          %p341 = scmp.lt.s32.totalorder %s32, 0
          %s342 = scalar_select %p341, %s32, 0
          %s343 = sadd.s32 %s342, %s340
          %s344 = smul.addr %s343, 4
          %s345 = scalar_lea.vmem %s1, %s344
          %s346 = ssub.s32 7, %s33
        $region48: #{tpu_custom_call.1} parent=39 // pred_fallthru
          _
      $region40: #{tpu_custom_call.1} parent=5 // pred_fallthru
        _
      %p347 = scmp.le.s32.totalorder 1, %s25
      %p348 = scmp.lt.s32.totalorder %s25, 9
      %p349 = pnand %p347, %p348
      %p350 = pneg %p349
      // Predicated region
      $region49: #{tpu_custom_call.1} parent=5 // pred_check
        _
      $region50: #{tpu_custom_call.1} parent=5 // pred_check_branch
        %352 = sbr.rel (%p349) target = $region52
      $region51: #{tpu_custom_call.1} parent=5 // pred_region
        %s353 = ssub.s32 %s25, 1
        %s354 = sand.u32 %s52, 1
        %s355 = scalar_lea.sflag [#allocation5], %s354
        %s356 = sand.u32 %s52, 1
        %s357 = smul.addr %s356, 4
        %s358 = scalar_lea.vmem [#allocation4], %s357
        // Predicated region
        $region53: #{tpu_custom_call.1} parent=51 // pred_check
          %p359 = pneg %p65
        $region54: #{tpu_custom_call.1} parent=51 // pred_check_branch
          %361 = sbr.rel (%p359) target = $region56
        $region55: #{tpu_custom_call.1} parent=51 // pred_region
          %362 = dma.done %s355, 64
        $region56: #{tpu_custom_call.1} parent=51 // pred_fallthru
          _
        %s363 = sand.u32 %s52, 1
        %s364 = scalar_lea.sflag [#allocation5], %s363
        %s365 = sand.u32 %s52, 1
        %s366 = smul.addr %s365, 4
        %s367 = scalar_lea.vmem [#allocation4], %s366
        %p368 = pneg %p65
        %p369 = pneg %p62
        %s370 = ssub.s32 7, %s35
        %p371 = scmp.lt.s32.totalorder %s370, 7
        %s372 = scalar_select %p371, %s370, 7
        %p373 = scmp.lt.s32.totalorder %s34, 0
        %s374 = scalar_select %p373, %s34, 0
        %s375 = sadd.s32 %s374, %s372
        %s376 = smul.addr %s375, 4
        %s377 = scalar_lea.vmem %s1, %s376
        %p378 = pneg %p95
        %p379 = pneg %p92
        %p380 = pneg %p116
        %p381 = pneg %p113
        %p382 = pneg %p137
        %p383 = pneg %p134
        %p384 = pneg %p158
        %p385 = pneg %p155
        %p386 = pneg %p179
        %p387 = pneg %p176
        %p388 = pneg %p200
        %p389 = pneg %p197
        %p390 = pneg %p221
        %p391 = pneg %p218
        %p392 = pneg %p249
        %p393 = pneg %p246
        %s394 = sand.u32 %s236, 1
        %s395 = scalar_lea.sflag [#allocation6], %s394
        %s396 = sand.u32 %s236, 1
        %s397 = smul.addr %s396, 2
        %s398 = scalar_lea.vmem [#allocation7], %s397
        %p399 = pneg %p279
        %p400 = pneg %p276
        %s401 = sand.u32 %s266, 1
        %s402 = scalar_lea.sflag [#allocation9], %s401
        %s403 = sand.u32 %s266, 1
        %s404 = smul.addr %s403, 2
        %s405 = scalar_lea.vmem [#allocation8], %s404
        %s406 = ssub.s32 7, %s35
        %p407 = scmp.lt.s32.totalorder %s406, 7
        %s408 = scalar_select %p407, %s406, 7
        %p409 = scmp.lt.s32.totalorder %s34, 0
        %s410 = scalar_select %p409, %s34, 0
        %s411 = sadd.s32 %s410, %s408
        %s412 = smul.addr %s411, 4
        %s413 = scalar_lea.vmem %s1, %s412
        %s414 = ssub.s32 7, %s35
        %s415 = ssub.s32 7, %s35
        %p416 = scmp.eq.s32.totalorder %s35, 0
        // Predicated region
        $region57: #{tpu_custom_call.1} parent=51 // pred_check
          %p417 = pneg %p416
        $region58: #{tpu_custom_call.1} parent=51 // pred_check_branch
          %419 = sbr.rel (%p417) target = $region60
        $region59: #{tpu_custom_call.1} parent=51 // pred_region
          %420 = vst [vmem:[#allocation2] sm:$0x3] 0.0
          %421 = vst [vmem:[#allocation3] sm:$0x3] 0.0
        $region60: #{tpu_custom_call.1} parent=51 // pred_fallthru
          _
        %v422 = vld [vmem:[%s358] sm:$0xf]
        %v423 = vld [vmem:[%s2] sm:$0xff]
        %v424 = vld [vmem:[%s3] sm:$0xff]
        %426 = vset.pattern.permute.xlu0 0
        %427 = vperm.xlu0 %426, %v424
        %v428 = vpop.permute.xlu0 %427
        %vm430 = vcmask 31744
        %v432 = vsel %vm430, %v423, 0
        %vm434 = vcmask 1043456
        %v436 = vsel %vm434, %v422, 0
        %438 = vmatprep.subr.mxu0 0.0
        %439 = vmatpush1.msra.mxu0 %v436
        %440 = vmatprep.subr.mxu0 0.0
        %441 = vmatpush1.msra.mxu0 0.0
        %442 = vmatprep.subr.mxu0 0.0
        %443 = vmatpush1.msra.mxu0 0.0
        %444 = vmatprep.subr.mxu0 0.0
        %445 = vmatpush1.msra.mxu0 0.0
        %446 = vmatprep.subr.mxu0 0.0
        %447 = vmatpush1.msra.mxu0 0.0
        %448 = vmatprep.subr.mxu0 0.0
        %449 = vmatpush1.msra.mxu0 0.0
        %450 = vmatprep.subr.mxu0 0.0
        %451 = vmatpush1.msra.mxu0 0.0
        %452 = vmatprep.subr.mxu0 0.0
        %453 = vmatpush1.msra.mxu0 0.0
        %454 = vmatprep.subr.mxu0 0.0
        %455 = vmatpush1.msra.mxu0 0.0
        %456 = vmatprep.subr.mxu0 0.0
        %457 = vmatpush1.msra.mxu0 0.0
        %458 = vmatprep.subr.mxu0 0.0
        %459 = vmatpush1.msra.mxu0 0.0
        %460 = vmatprep.subr.mxu0 0.0
        %461 = vmatpush1.msra.mxu0 0.0
        %462 = vmatprep.subr.mxu0 0.0
        %463 = vmatpush1.msra.mxu0 0.0
        %464 = vmatprep.subr.mxu0 0.0
        %465 = vmatpush1.msra.mxu0 0.0
        %466 = vmatprep.subr.mxu0 0.0
        %467 = vmatpush1.msra.mxu0 0.0
        %468 = vmatprep.subr.mxu0 0.0
        %469 = vmatpush1.msra.mxu0 0.0
        %470 = vmatprep.subr.mxu0 0.0
        %471 = vmatpush1.msra.mxu0 0.0
        %472 = vmatprep.subr.mxu0 0.0
        %473 = vmatpush1.msra.mxu0 0.0
        %474 = vmatprep.subr.mxu0 0.0
        %475 = vmatpush1.msra.mxu0 0.0
        %476 = vmatprep.subr.mxu0 0.0
        %477 = vmatpush1.msra.mxu0 0.0
        %478 = vmatprep.subr.mxu0 0.0
        %479 = vmatpush1.msra.mxu0 0.0
        %480 = vmatprep.subr.mxu0 0.0
        %481 = vmatpush1.msra.mxu0 0.0
        %482 = vmatprep.subr.mxu0 0.0
        %483 = vmatpush1.msra.mxu0 0.0
        %484 = vmatprep.subr.mxu0 0.0
        %485 = vmatpush1.msra.mxu0 0.0
        %486 = vmatprep.subr.mxu0 0.0
        %487 = vmatpush1.msra.mxu0 0.0
        %488 = vmatprep.subr.mxu0 0.0
        %489 = vmatpush1.msra.mxu0 0.0
        %490 = vmatprep.subr.mxu0 0.0
        %491 = vmatpush1.msra.mxu0 0.0
        %492 = vmatprep.subr.mxu0 0.0
        %493 = vmatpush1.msra.mxu0 0.0
        %494 = vmatprep.subr.mxu0 0.0
        %495 = vmatpush1.msra.mxu0 0.0
        %496 = vmatprep.subr.mxu0 0.0
        %497 = vmatpush1.msra.mxu0 0.0
        %498 = vmatprep.subr.mxu0 0.0
        %499 = vmatpush1.msra.mxu0 0.0
        %500 = vmatprep.subr.mxu0 0.0
        %501 = vmatpush1.msra.mxu0 0.0
        %502 = vmatprep.mubr.f32.mxu0 0.0
        %503 = vmatmul.mubr.f32.gmra.mrb[0].mxu0 %v432
        %v504 = vpop.f32.mrb[0].mxu0
        %v505 = vadd.f32 %v428, %v504
        %v506 = vpop.f32.mrb[0].mxu0
        %507 = vdwg.mxu0
        %v508 = vtanh.pop %v505
        %v509 = vld [vmem:[%s4] sm:$0xf]
        %v510 = vld [vmem:[%s5] sm:$0xf]
        %512 = vset.pattern.permute.xlu0 0
        %513 = vperm.xlu0 %512, %v510
        %v514 = vpop.permute.xlu0 %513
        %v517 = vsel %vm430, %v509, 0
        %v520 = vsel %vm434, %v508, 0
        %522 = vmatprep.subr.mxu0 0.0
        %523 = vmatpush1.msra.mxu0 %v520
        %524 = vmatprep.subr.mxu0 0.0
        %525 = vmatpush1.msra.mxu0 0.0
        %526 = vmatprep.subr.mxu0 0.0
        %527 = vmatpush1.msra.mxu0 0.0
        %528 = vmatprep.subr.mxu0 0.0
        %529 = vmatpush1.msra.mxu0 0.0
        %530 = vmatprep.subr.mxu0 0.0
        %531 = vmatpush1.msra.mxu0 0.0
        %532 = vmatprep.subr.mxu0 0.0
        %533 = vmatpush1.msra.mxu0 0.0
        %534 = vmatprep.subr.mxu0 0.0
        %535 = vmatpush1.msra.mxu0 0.0
        %536 = vmatprep.subr.mxu0 0.0
        %537 = vmatpush1.msra.mxu0 0.0
        %538 = vmatprep.subr.mxu0 0.0
        %539 = vmatpush1.msra.mxu0 0.0
        %540 = vmatprep.subr.mxu0 0.0
        %541 = vmatpush1.msra.mxu0 0.0
        %542 = vmatprep.subr.mxu0 0.0
        %543 = vmatpush1.msra.mxu0 0.0
        %544 = vmatprep.subr.mxu0 0.0
        %545 = vmatpush1.msra.mxu0 0.0
        %546 = vmatprep.subr.mxu0 0.0
        %547 = vmatpush1.msra.mxu0 0.0
        %548 = vmatprep.subr.mxu0 0.0
        %549 = vmatpush1.msra.mxu0 0.0
        %550 = vmatprep.subr.mxu0 0.0
        %551 = vmatpush1.msra.mxu0 0.0
        %552 = vmatprep.subr.mxu0 0.0
        %553 = vmatpush1.msra.mxu0 0.0
        %554 = vmatprep.subr.mxu0 0.0
        %555 = vmatpush1.msra.mxu0 0.0
        %556 = vmatprep.subr.mxu0 0.0
        %557 = vmatpush1.msra.mxu0 0.0
        %558 = vmatprep.subr.mxu0 0.0
        %559 = vmatpush1.msra.mxu0 0.0
        %560 = vmatprep.subr.mxu0 0.0
        %561 = vmatpush1.msra.mxu0 0.0
        %562 = vmatprep.subr.mxu0 0.0
        %563 = vmatpush1.msra.mxu0 0.0
        %564 = vmatprep.subr.mxu0 0.0
        %565 = vmatpush1.msra.mxu0 0.0
        %566 = vmatprep.subr.mxu0 0.0
        %567 = vmatpush1.msra.mxu0 0.0
        %568 = vmatprep.subr.mxu0 0.0
        %569 = vmatpush1.msra.mxu0 0.0
        %570 = vmatprep.subr.mxu0 0.0
        %571 = vmatpush1.msra.mxu0 0.0
        %572 = vmatprep.subr.mxu0 0.0
        %573 = vmatpush1.msra.mxu0 0.0
        %574 = vmatprep.subr.mxu0 0.0
        %575 = vmatpush1.msra.mxu0 0.0
        %576 = vmatprep.subr.mxu0 0.0
        %577 = vmatpush1.msra.mxu0 0.0
        %578 = vmatprep.subr.mxu0 0.0
        %579 = vmatpush1.msra.mxu0 0.0
        %580 = vmatprep.subr.mxu0 0.0
        %581 = vmatpush1.msra.mxu0 0.0
        %582 = vmatprep.subr.mxu0 0.0
        %583 = vmatpush1.msra.mxu0 0.0
        %584 = vmatprep.subr.mxu0 0.0
        %585 = vmatpush1.msra.mxu0 0.0
        %586 = vmatprep.mubr.f32.mxu0 0.0
        %587 = vmatmul.mubr.f32.gmra.mrb[0].mxu0 %v517
        %v588 = vpop.f32.mrb[0].mxu0
        %v589 = vadd.f32 %v514, %v588
        %v590 = vpop.f32.mrb[0].mxu0
        %591 = vdwg.mxu0
        %v592 = vtanh.pop %v589
        %v593 = vrot.slane %v509, 2
        %v594 = vrot.slane %v508, 4
        %v595 = vrot.slane %v514, 2
        %v597 = vsel %vm430, %v593, 0
        %v599 = vsel %vm434, %v594, 0
        %601 = vmatprep.subr.mxu0 0.0
        %602 = vmatpush1.msra.mxu0 %v599
        %603 = vmatprep.subr.mxu0 0.0
        %604 = vmatpush1.msra.mxu0 0.0
        %605 = vmatprep.subr.mxu0 0.0
        %606 = vmatpush1.msra.mxu0 0.0
        %607 = vmatprep.subr.mxu0 0.0
        %608 = vmatpush1.msra.mxu0 0.0
        %609 = vmatprep.subr.mxu0 0.0
        %610 = vmatpush1.msra.mxu0 0.0
        %611 = vmatprep.subr.mxu0 0.0
        %612 = vmatpush1.msra.mxu0 0.0
        %613 = vmatprep.subr.mxu0 0.0
        %614 = vmatpush1.msra.mxu0 0.0
        %615 = vmatprep.subr.mxu0 0.0
        %616 = vmatpush1.msra.mxu0 0.0
        %617 = vmatprep.subr.mxu0 0.0
        %618 = vmatpush1.msra.mxu0 0.0
        %619 = vmatprep.subr.mxu0 0.0
        %620 = vmatpush1.msra.mxu0 0.0
        %621 = vmatprep.subr.mxu0 0.0
        %622 = vmatpush1.msra.mxu0 0.0
        %623 = vmatprep.subr.mxu0 0.0
        %624 = vmatpush1.msra.mxu0 0.0
        %625 = vmatprep.subr.mxu0 0.0
        %626 = vmatpush1.msra.mxu0 0.0
        %627 = vmatprep.subr.mxu0 0.0
        %628 = vmatpush1.msra.mxu0 0.0
        %629 = vmatprep.subr.mxu0 0.0
        %630 = vmatpush1.msra.mxu0 0.0
        %631 = vmatprep.subr.mxu0 0.0
        %632 = vmatpush1.msra.mxu0 0.0
        %633 = vmatprep.subr.mxu0 0.0
        %634 = vmatpush1.msra.mxu0 0.0
        %635 = vmatprep.subr.mxu0 0.0
        %636 = vmatpush1.msra.mxu0 0.0
        %637 = vmatprep.subr.mxu0 0.0
        %638 = vmatpush1.msra.mxu0 0.0
        %639 = vmatprep.subr.mxu0 0.0
        %640 = vmatpush1.msra.mxu0 0.0
        %641 = vmatprep.subr.mxu0 0.0
        %642 = vmatpush1.msra.mxu0 0.0
        %643 = vmatprep.subr.mxu0 0.0
        %644 = vmatpush1.msra.mxu0 0.0
        %645 = vmatprep.subr.mxu0 0.0
        %646 = vmatpush1.msra.mxu0 0.0
        %647 = vmatprep.subr.mxu0 0.0
        %648 = vmatpush1.msra.mxu0 0.0
        %649 = vmatprep.subr.mxu0 0.0
        %650 = vmatpush1.msra.mxu0 0.0
        %651 = vmatprep.subr.mxu0 0.0
        %652 = vmatpush1.msra.mxu0 0.0
        %653 = vmatprep.subr.mxu0 0.0
        %654 = vmatpush1.msra.mxu0 0.0
        %655 = vmatprep.subr.mxu0 0.0
        %656 = vmatpush1.msra.mxu0 0.0
        %657 = vmatprep.subr.mxu0 0.0
        %658 = vmatpush1.msra.mxu0 0.0
        %659 = vmatprep.subr.mxu0 0.0
        %660 = vmatpush1.msra.mxu0 0.0
        %661 = vmatprep.subr.mxu0 0.0
        %662 = vmatpush1.msra.mxu0 0.0
        %663 = vmatprep.subr.mxu0 0.0
        %664 = vmatpush1.msra.mxu0 0.0
        %665 = vmatprep.mubr.f32.mxu0 0.0
        %666 = vmatmul.mubr.f32.gmra.mrb[0].mxu0 %v597
        %v667 = vpop.f32.mrb[0].mxu0
        %v668 = vadd.f32 %v595, %v667
        %v669 = vpop.f32.mrb[0].mxu0
        %670 = vdwg.mxu0
        %v671 = vxor.u32 %v668, 2147483648
        %v672 = vmul.f32 %v671, 1.442695
        %v673 = vpow.pop %v672
        %v674 = vadd.f32 %v673, 1.0
        %v675 = vrcp.pop %v674
        %v676 = vmul.f32 1.0, %v675
        %v677 = vld [vmem:[#allocation2] sm:$0x3]
        %v678 = vmul.f32 %v676, %v677
        %v679 = vsub.f32 1.0, %v676
        %v680 = vmul.f32 %v679, %v592
        %v681 = vadd.f32 %v678, %v680
        %682 = vst [vmem:[#allocation2] sm:$0x3] %v681
        %683 = vst [vmem:[%s398] sm:$0x3] %v681
        %v684 = vld [vmem:[%s413] sm:$0xf]
        %v685 = vld [vmem:[%s2] sm:$0xff]
        %v686 = vld [vmem:[%s3] sm:$0xff]
        %688 = vset.pattern.permute.xlu0 0
        %689 = vperm.xlu0 %688, %v686
        %v690 = vpop.permute.xlu0 %689
        %v693 = vsel %vm430, %v685, 0
        %v696 = vsel %vm434, %v684, 0
        %698 = vmatprep.subr.mxu0 0.0
        %699 = vmatpush1.msra.mxu0 %v696
        %700 = vmatprep.subr.mxu0 0.0
        %701 = vmatpush1.msra.mxu0 0.0
        %702 = vmatprep.subr.mxu0 0.0
        %703 = vmatpush1.msra.mxu0 0.0
        %704 = vmatprep.subr.mxu0 0.0
        %705 = vmatpush1.msra.mxu0 0.0
        %706 = vmatprep.subr.mxu0 0.0
        %707 = vmatpush1.msra.mxu0 0.0
        %708 = vmatprep.subr.mxu0 0.0
        %709 = vmatpush1.msra.mxu0 0.0
        %710 = vmatprep.subr.mxu0 0.0
        %711 = vmatpush1.msra.mxu0 0.0
        %712 = vmatprep.subr.mxu0 0.0
        %713 = vmatpush1.msra.mxu0 0.0
        %714 = vmatprep.subr.mxu0 0.0
        %715 = vmatpush1.msra.mxu0 0.0
        %716 = vmatprep.subr.mxu0 0.0
        %717 = vmatpush1.msra.mxu0 0.0
        %718 = vmatprep.subr.mxu0 0.0
        %719 = vmatpush1.msra.mxu0 0.0
        %720 = vmatprep.subr.mxu0 0.0
        %721 = vmatpush1.msra.mxu0 0.0
        %722 = vmatprep.subr.mxu0 0.0
        %723 = vmatpush1.msra.mxu0 0.0
        %724 = vmatprep.subr.mxu0 0.0
        %725 = vmatpush1.msra.mxu0 0.0
        %726 = vmatprep.subr.mxu0 0.0
        %727 = vmatpush1.msra.mxu0 0.0
        %728 = vmatprep.subr.mxu0 0.0
        %729 = vmatpush1.msra.mxu0 0.0
        %730 = vmatprep.subr.mxu0 0.0
        %731 = vmatpush1.msra.mxu0 0.0
        %732 = vmatprep.subr.mxu0 0.0
        %733 = vmatpush1.msra.mxu0 0.0
        %734 = vmatprep.subr.mxu0 0.0
        %735 = vmatpush1.msra.mxu0 0.0
        %736 = vmatprep.subr.mxu0 0.0
        %737 = vmatpush1.msra.mxu0 0.0
        %738 = vmatprep.subr.mxu0 0.0
        %739 = vmatpush1.msra.mxu0 0.0
        %740 = vmatprep.subr.mxu0 0.0
        %741 = vmatpush1.msra.mxu0 0.0
        %742 = vmatprep.subr.mxu0 0.0
        %743 = vmatpush1.msra.mxu0 0.0
        %744 = vmatprep.subr.mxu0 0.0
        %745 = vmatpush1.msra.mxu0 0.0
        %746 = vmatprep.subr.mxu0 0.0
        %747 = vmatpush1.msra.mxu0 0.0
        %748 = vmatprep.subr.mxu0 0.0
        %749 = vmatpush1.msra.mxu0 0.0
        %750 = vmatprep.subr.mxu0 0.0
        %751 = vmatpush1.msra.mxu0 0.0
        %752 = vmatprep.subr.mxu0 0.0
        %753 = vmatpush1.msra.mxu0 0.0
        %754 = vmatprep.subr.mxu0 0.0
        %755 = vmatpush1.msra.mxu0 0.0
        %756 = vmatprep.subr.mxu0 0.0
        %757 = vmatpush1.msra.mxu0 0.0
        %758 = vmatprep.subr.mxu0 0.0
        %759 = vmatpush1.msra.mxu0 0.0
        %760 = vmatprep.subr.mxu0 0.0
        %761 = vmatpush1.msra.mxu0 0.0
        %762 = vmatprep.mubr.f32.mxu0 0.0
        %763 = vmatmul.mubr.f32.gmra.mrb[0].mxu0 %v693
        %v764 = vpop.f32.mrb[0].mxu0
        %v765 = vadd.f32 %v690, %v764
        %v766 = vpop.f32.mrb[0].mxu0
        %767 = vdwg.mxu0
        %v768 = vtanh.pop %v765
        %v769 = vld [vmem:[%s6] sm:$0xf]
        %v770 = vld [vmem:[%s7] sm:$0xf]
        %772 = vset.pattern.permute.xlu0 0
        %773 = vperm.xlu0 %772, %v770
        %v774 = vpop.permute.xlu0 %773
        %v777 = vsel %vm430, %v769, 0
        %v780 = vsel %vm434, %v768, 0
        %782 = vmatprep.subr.mxu0 0.0
        %783 = vmatpush1.msra.mxu0 %v780
        %784 = vmatprep.subr.mxu0 0.0
        %785 = vmatpush1.msra.mxu0 0.0
        %786 = vmatprep.subr.mxu0 0.0
        %787 = vmatpush1.msra.mxu0 0.0
        %788 = vmatprep.subr.mxu0 0.0
        %789 = vmatpush1.msra.mxu0 0.0
        %790 = vmatprep.subr.mxu0 0.0
        %791 = vmatpush1.msra.mxu0 0.0
        %792 = vmatprep.subr.mxu0 0.0
        %793 = vmatpush1.msra.mxu0 0.0
        %794 = vmatprep.subr.mxu0 0.0
        %795 = vmatpush1.msra.mxu0 0.0
        %796 = vmatprep.subr.mxu0 0.0
        %797 = vmatpush1.msra.mxu0 0.0
        %798 = vmatprep.subr.mxu0 0.0
        %799 = vmatpush1.msra.mxu0 0.0
        %800 = vmatprep.subr.mxu0 0.0
        %801 = vmatpush1.msra.mxu0 0.0
        %802 = vmatprep.subr.mxu0 0.0
        %803 = vmatpush1.msra.mxu0 0.0
        %804 = vmatprep.subr.mxu0 0.0
        %805 = vmatpush1.msra.mxu0 0.0
        %806 = vmatprep.subr.mxu0 0.0
        %807 = vmatpush1.msra.mxu0 0.0
        %808 = vmatprep.subr.mxu0 0.0
        %809 = vmatpush1.msra.mxu0 0.0
        %810 = vmatprep.subr.mxu0 0.0
        %811 = vmatpush1.msra.mxu0 0.0
        %812 = vmatprep.subr.mxu0 0.0
        %813 = vmatpush1.msra.mxu0 0.0
        %814 = vmatprep.subr.mxu0 0.0
        %815 = vmatpush1.msra.mxu0 0.0
        %816 = vmatprep.subr.mxu0 0.0
        %817 = vmatpush1.msra.mxu0 0.0
        %818 = vmatprep.subr.mxu0 0.0
        %819 = vmatpush1.msra.mxu0 0.0
        %820 = vmatprep.subr.mxu0 0.0
        %821 = vmatpush1.msra.mxu0 0.0
        %822 = vmatprep.subr.mxu0 0.0
        %823 = vmatpush1.msra.mxu0 0.0
        %824 = vmatprep.subr.mxu0 0.0
        %825 = vmatpush1.msra.mxu0 0.0
        %826 = vmatprep.subr.mxu0 0.0
        %827 = vmatpush1.msra.mxu0 0.0
        %828 = vmatprep.subr.mxu0 0.0
        %829 = vmatpush1.msra.mxu0 0.0
        %830 = vmatprep.subr.mxu0 0.0
        %831 = vmatpush1.msra.mxu0 0.0
        %832 = vmatprep.subr.mxu0 0.0
        %833 = vmatpush1.msra.mxu0 0.0
        %834 = vmatprep.subr.mxu0 0.0
        %835 = vmatpush1.msra.mxu0 0.0
        %836 = vmatprep.subr.mxu0 0.0
        %837 = vmatpush1.msra.mxu0 0.0
        %838 = vmatprep.subr.mxu0 0.0
        %839 = vmatpush1.msra.mxu0 0.0
        %840 = vmatprep.subr.mxu0 0.0
        %841 = vmatpush1.msra.mxu0 0.0
        %842 = vmatprep.subr.mxu0 0.0
        %843 = vmatpush1.msra.mxu0 0.0
        %844 = vmatprep.subr.mxu0 0.0
        %845 = vmatpush1.msra.mxu0 0.0
        %846 = vmatprep.mubr.f32.mxu0 0.0
        %847 = vmatmul.mubr.f32.gmra.mrb[0].mxu0 %v777
        %v848 = vpop.f32.mrb[0].mxu0
        %v849 = vadd.f32 %v774, %v848
        %v850 = vpop.f32.mrb[0].mxu0
        %851 = vdwg.mxu0
        %v852 = vtanh.pop %v849
        %v853 = vrot.slane %v769, 2
        %v854 = vrot.slane %v768, 4
        %v855 = vrot.slane %v774, 2
        %v857 = vsel %vm430, %v853, 0
        %v859 = vsel %vm434, %v854, 0
        %861 = vmatprep.subr.mxu0 0.0
        %862 = vmatpush1.msra.mxu0 %v859
        %863 = vmatprep.subr.mxu0 0.0
        %864 = vmatpush1.msra.mxu0 0.0
        %865 = vmatprep.subr.mxu0 0.0
        %866 = vmatpush1.msra.mxu0 0.0
        %867 = vmatprep.subr.mxu0 0.0
        %868 = vmatpush1.msra.mxu0 0.0
        %869 = vmatprep.subr.mxu0 0.0
        %870 = vmatpush1.msra.mxu0 0.0
        %871 = vmatprep.subr.mxu0 0.0
        %872 = vmatpush1.msra.mxu0 0.0
        %873 = vmatprep.subr.mxu0 0.0
        %874 = vmatpush1.msra.mxu0 0.0
        %875 = vmatprep.subr.mxu0 0.0
        %876 = vmatpush1.msra.mxu0 0.0
        %877 = vmatprep.subr.mxu0 0.0
        %878 = vmatpush1.msra.mxu0 0.0
        %879 = vmatprep.subr.mxu0 0.0
        %880 = vmatpush1.msra.mxu0 0.0
        %881 = vmatprep.subr.mxu0 0.0
        %882 = vmatpush1.msra.mxu0 0.0
        %883 = vmatprep.subr.mxu0 0.0
        %884 = vmatpush1.msra.mxu0 0.0
        %885 = vmatprep.subr.mxu0 0.0
        %886 = vmatpush1.msra.mxu0 0.0
        %887 = vmatprep.subr.mxu0 0.0
        %888 = vmatpush1.msra.mxu0 0.0
        %889 = vmatprep.subr.mxu0 0.0
        %890 = vmatpush1.msra.mxu0 0.0
        %891 = vmatprep.subr.mxu0 0.0
        %892 = vmatpush1.msra.mxu0 0.0
        %893 = vmatprep.subr.mxu0 0.0
        %894 = vmatpush1.msra.mxu0 0.0
        %895 = vmatprep.subr.mxu0 0.0
        %896 = vmatpush1.msra.mxu0 0.0
        %897 = vmatprep.subr.mxu0 0.0
        %898 = vmatpush1.msra.mxu0 0.0
        %899 = vmatprep.subr.mxu0 0.0
        %900 = vmatpush1.msra.mxu0 0.0
        %901 = vmatprep.subr.mxu0 0.0
        %902 = vmatpush1.msra.mxu0 0.0
        %903 = vmatprep.subr.mxu0 0.0
        %904 = vmatpush1.msra.mxu0 0.0
        %905 = vmatprep.subr.mxu0 0.0
        %906 = vmatpush1.msra.mxu0 0.0
        %907 = vmatprep.subr.mxu0 0.0
        %908 = vmatpush1.msra.mxu0 0.0
        %909 = vmatprep.subr.mxu0 0.0
        %910 = vmatpush1.msra.mxu0 0.0
        %911 = vmatprep.subr.mxu0 0.0
        %912 = vmatpush1.msra.mxu0 0.0
        %913 = vmatprep.subr.mxu0 0.0
        %914 = vmatpush1.msra.mxu0 0.0
        %915 = vmatprep.subr.mxu0 0.0
        %916 = vmatpush1.msra.mxu0 0.0
        %917 = vmatprep.subr.mxu0 0.0
        %918 = vmatpush1.msra.mxu0 0.0
        %919 = vmatprep.subr.mxu0 0.0
        %920 = vmatpush1.msra.mxu0 0.0
        %921 = vmatprep.subr.mxu0 0.0
        %922 = vmatpush1.msra.mxu0 0.0
        %923 = vmatprep.subr.mxu0 0.0
        %924 = vmatpush1.msra.mxu0 0.0
        %925 = vmatprep.mubr.f32.mxu0 0.0
        %926 = vmatmul.mubr.f32.gmra.mrb[0].mxu0 %v857
        %v927 = vpop.f32.mrb[0].mxu0
        %v928 = vadd.f32 %v855, %v927
        %v929 = vpop.f32.mrb[0].mxu0
        %930 = vdwg.mxu0
        %v931 = vxor.u32 %v928, 2147483648
        %v932 = vmul.f32 %v931, 1.442695
        %v933 = vpow.pop %v932
        %v934 = vadd.f32 %v933, 1.0
        %v935 = vrcp.pop %v934
        %v936 = vmul.f32 1.0, %v935
        %v937 = vld [vmem:[#allocation3] sm:$0x3]
        %v938 = vmul.f32 %v936, %v937
        %v939 = vsub.f32 1.0, %v936
        %v940 = vmul.f32 %v939, %v852
        %v941 = vadd.f32 %v938, %v940
        %942 = vst [vmem:[#allocation3] sm:$0x3] %v941
        %943 = vst [vmem:[%s405] sm:$0x3] %v941
        %s944 = sand.u32 %s236, 1
        %s945 = scalar_lea.sflag [#allocation6], %s944
        %s946 = sand.u32 %s236, 1
        %s947 = smul.addr %s946, 2
        %s948 = scalar_lea.vmem [#allocation7], %s947
        %s949 = sand.u32 %s266, 1
        %s950 = scalar_lea.sflag [#allocation9], %s949
        %s951 = sand.u32 %s266, 1
        %s952 = smul.addr %s951, 2
        %s953 = scalar_lea.vmem [#allocation8], %s952
        // Predicated region
        $region61: #{tpu_custom_call.1} parent=51 // pred_check
          %p954 = pneg %p246
        $region62: #{tpu_custom_call.1} parent=51 // pred_check_branch
          %956 = sbr.rel (%p954) target = $region64
        $region63: #{tpu_custom_call.1} parent=51 // pred_region
          %s958 = ssub.s32 32, 32
          %959 = vsyncadd %s945, %s958
          %s960 = sadd.s32 %s34, %s35
          %s961 = smul.addr %s960, 32
          %s962 = scalar_lea.hbm %s8, %s961
          %s964 = sshll.u32 %s948, 4
          %s965 = int_to_ptr.vmem [resolvable:$true] %s964
          %967 = dma.vmem_to_hbm [thread:$0]  %s965, 32, %s962, %s945
        $region64: #{tpu_custom_call.1} parent=51 // pred_fallthru
          _
        // Predicated region
        $region65: #{tpu_custom_call.1} parent=51 // pred_check
          %p968 = pneg %p276
        $region66: #{tpu_custom_call.1} parent=51 // pred_check_branch
          %970 = sbr.rel (%p968) target = $region68
        $region67: #{tpu_custom_call.1} parent=51 // pred_region
          %s971 = ssub.s32 7, %s35
          %s973 = ssub.s32 32, 32
          %974 = vsyncadd %s950, %s973
          %s975 = sadd.s32 %s34, %s971
          %s976 = smul.addr %s975, 32
          %s977 = scalar_lea.hbm %s9, %s976
          %s979 = sshll.u32 %s953, 4
          %s980 = int_to_ptr.vmem [resolvable:$true] %s979
          %982 = dma.vmem_to_hbm [thread:$0]  %s980, 32, %s977, %s950
        $region68: #{tpu_custom_call.1} parent=51 // pred_fallthru
          _
      $region52: #{tpu_custom_call.1} parent=5 // pred_fallthru
        _
      %p983 = scmp.le.s32.totalorder 2, %s25
      // Predicated region
      $region69: #{tpu_custom_call.1} parent=5 // pred_check
        %p984 = pneg %p983
      $region70: #{tpu_custom_call.1} parent=5 // pred_check_branch
        %986 = sbr.rel (%p984) target = $region72
      $region71: #{tpu_custom_call.1} parent=5 // pred_region
        %s987 = ssub.s32 %s25, 2
        // Predicated region
        $region73: #{tpu_custom_call.1} parent=71 // pred_check
          %p988 = pneg %p252
        $region74: #{tpu_custom_call.1} parent=71 // pred_check_branch
          %990 = sbr.rel (%p988) target = $region76
        $region75: #{tpu_custom_call.1} parent=71 // pred_region
          %s991 = sand.u32 %s237, 1
          %s992 = scalar_lea.sflag [#allocation6], %s991
          %s993 = sand.u32 %s237, 1
          %s994 = smul.addr %s993, 2
          %s995 = scalar_lea.vmem [#allocation7], %s994
          %996 = dma.done %s992, 32
        $region76: #{tpu_custom_call.1} parent=71 // pred_fallthru
          _
        // Predicated region
        $region77: #{tpu_custom_call.1} parent=71 // pred_check
          %p997 = pneg %p282
        $region78: #{tpu_custom_call.1} parent=71 // pred_check_branch
          %999 = sbr.rel (%p997) target = $region80
        $region79: #{tpu_custom_call.1} parent=71 // pred_region
          %s1000 = sand.u32 %s267, 1
          %s1001 = scalar_lea.sflag [#allocation9], %s1000
          %s1002 = sand.u32 %s267, 1
          %s1003 = smul.addr %s1002, 2
          %s1004 = scalar_lea.vmem [#allocation8], %s1003
          %1005 = dma.done %s1001, 32
        $region80: #{tpu_custom_call.1} parent=71 // pred_fallthru
          _
      $region72: #{tpu_custom_call.1} parent=5 // pred_fallthru
        _
    $region6: #{tpu_custom_call.1} parent=1 // loop_footer
      %s29 = sadd.s32 1, %s25
    $region7: #{tpu_custom_call.1} parent=1 // loop_footer_branch
      %24 = sbr.rel target = $region3
    $region8: #{tpu_custom_call.1} parent=1 // loop_exit
      _
    %1006 = vsyncpa [#allocation5], 1
    %s1007 = scalar_lea.sflag [#allocation5], 1
    %1008 = vsyncpa %s1007, 1
    %1009 = vsyncpa [#allocation6], 1
    %s1010 = scalar_lea.sflag [#allocation6], 1
    %1011 = vsyncpa %s1010, 1
    %1012 = vsyncpa [#allocation9], 1
    %s1013 = scalar_lea.sflag [#allocation9], 1
    %1014 = vsyncpa %s1013, 1

</llo_original>
